<compile_context>
chip_gen: v5e
topology: v5e:2x2
jax: 0.10.0
libtpu: 0.0.40
codegen_flags: <defaults>
</compile_context>

<pallas_src>
import math
from functools import partial

import jax
import jax.numpy as jnp
import numpy as np
from jax.experimental import pallas as pl
from jax.experimental.pallas import tpu as pltpu


def _layer_norm(v, g, b, eps=1e-5):
    mu = jnp.mean(v, axis=-1, keepdims=True)
    var = jnp.mean((v - mu) ** 2, axis=-1, keepdims=True)
    return (v - mu) * jax.lax.rsqrt(var + eps) * g + b


# --------------------------------------------------------------------------- #
# Kernel 1: LN_attn + dense fused QKV projection                              #
# --------------------------------------------------------------------------- #
def _qkv_proj_kernel(x_ref, ga_ref, ba_ref, wqkv_ref, bqkv_ref, qkv_ref, *, mm_dtype):
    a = _layer_norm(x_ref[0], ga_ref[...], ba_ref[...])              # (tS, D) f32
    qkv = jnp.dot(a.astype(mm_dtype), wqkv_ref[...],
                  preferred_element_type=jnp.float32) + bqkv_ref[...]
    qkv_ref[0] = qkv.astype(qkv_ref.dtype)                           # lane-dense store


# --------------------------------------------------------------------------- #
# Kernel 2: flash attention + output projection + first residual              #
# --------------------------------------------------------------------------- #
def _attention_kernel(x_ref, q_ref, k_ref, v_ref, wo_ref, bo_ref, out_ref,
                      m_sc, l_sc, acc_sc,
                      *, heads, scale, mm_dtype, approx_recip):
    ki = pl.program_id(2)

    @pl.when(ki == 0)
    def _init():
        m_sc[...] = jnp.full(m_sc.shape, -jnp.inf, m_sc.dtype)
        l_sc[...] = jnp.zeros(l_sc.shape, l_sc.dtype)
        acc_sc[...] = jnp.zeros(acc_sc.shape, acc_sc.dtype)

    q = q_ref[0]                                                      # (H, tQ, dh)
    k = k_ref[0]                                                      # (H, tK, dh)
    v = v_ref[0]                                                      # (H, tK, dh)

    # f32 scores; 1/sqrt(dh) applied in f32 after the matmul (accuracy on bf16 path).
    s = jnp.einsum("hqd,hkd->hqk", q, k,
                   preferred_element_type=jnp.float32) * scale        # (H, tQ, tK)

    m_prev = m_sc[...]                                                # (H, tQ) lane-dense
    m_new = jnp.maximum(m_prev, jnp.max(s, axis=-1))
    alpha = jnp.exp(m_prev - m_new)
    p = jnp.exp(s - m_new[:, :, None])
    l_sc[...] = alpha * l_sc[...] + jnp.sum(p, axis=-1)
    acc_sc[...] = alpha[:, :, None] * acc_sc[...] + jnp.einsum(
        "hqk,hkd->hqd", p.astype(mm_dtype), v, preferred_element_type=jnp.float32)
    m_sc[...] = m_new

    @pl.when(ki == pl.num_programs(2) - 1)
    def _finalize():
        inv_l = pl.reciprocal(l_sc[...], approx=approx_recip)         # (H, tQ)
        o = (acc_sc[...] * inv_l[:, :, None]).astype(mm_dtype)        # (H, tQ, dh)
        # Contract heads by accumulating per-head matmuls (no (H, tQ, D) intermediate,
        # no separate head-axis reduction).
        attn = jnp.dot(o[0], wo_ref[0], preferred_element_type=jnp.float32)
        for h in range(1, heads):
            attn = attn + jnp.dot(o[h], wo_ref[h], preferred_element_type=jnp.float32)
        out_ref[0] = (x_ref[0] + attn + bo_ref[...]).astype(out_ref.dtype)


# --------------------------------------------------------------------------- #
# Kernel 3: LN_ff + feed-forward streamed over R tiles + residual             #
# --------------------------------------------------------------------------- #
def _ffn_kernel(x_ref, gf_ref, bf_ref, w1_ref, b1_ref, w2_ref, b2_ref, out_ref,
                f_sc, acc_sc, *, mm_dtype):
    r = pl.program_id(2)

    @pl.when(r == 0)
    def _init():
        f_sc[...] = _layer_norm(x_ref[0], gf_ref[...], bf_ref[...]).astype(f_sc.dtype)
        acc_sc[...] = jnp.zeros(acc_sc.shape, acc_sc.dtype)

    h1 = jnp.dot(f_sc[...], w1_ref[...],
                 preferred_element_type=jnp.float32) + b1_ref[...]    # (tS, tR) f32
    h1 = h1 * jax.nn.sigmoid(h1)                                      # Swish (f32)
    acc_sc[...] += jnp.dot(h1.astype(mm_dtype), w2_ref[...],
                           preferred_element_type=jnp.float32)

    @pl.when(r == pl.num_programs(2) - 1)
    def _finalize():
        out_ref[0] = (x_ref[0] + acc_sc[...] + b2_ref[...]).astype(out_ref.dtype)


# --------------------------------------------------------------------------- #
# Wrapper                                                                     #
# --------------------------------------------------------------------------- #
def _forward(x, params, *, heads, block_q, block_k, block_s, block_r,
             mm_dtype, approx_recip, single_buffer_weights, kv_buffer_count,
             vmem_limit_bytes):
    B, S, D = x.shape
    dh = D // heads
    R = params["w1"].shape[1]
    nq, nk, ns, nr = S // block_q, S // block_k, S // block_s, R // block_r
    f32 = jnp.float32

    def const_spec(shape):
        idx = lambda *_: (0,) * len(shape)
        if single_buffer_weights:
            # grid-invariant -> single buffer: halves weight VMEM residency.
            return pl.BlockSpec(shape, idx, pipeline_mode=pl.Buffered(1))
        return pl.BlockSpec(shape, idx)

    def kv_spec(shape, idx):
        if kv_buffer_count is not None:       # optional deeper KV pipelining (e.g. 3 on v6e)
            return pl.BlockSpec(shape, idx, pipeline_mode=pl.Buffered(kv_buffer_count))
        return pl.BlockSpec(shape, idx)

    # Fused QKV weight (D, 3D); dense matmul fills the MXU (N = 3D, not dh).
    wqkv = jnp.concatenate([params["wq"], params["wk"], params["wv"]], axis=1).astype(mm_dtype)
    bqkv = jnp.concatenate([params["bq"], params["bk"], params["bv"]], axis=1).astype(f32)
    wo_h = params["wo"].reshape(heads, dh, D).astype(mm_dtype)        # (H, dh, D)
    w1 = params["w1"].astype(mm_dtype)
    w2 = params["w2"].astype(mm_dtype)

    # ---- 1) prologue: LN_attn + dense QKV projection (computed once per row) ----
    qkv = pl.pallas_call(
        partial(_qkv_proj_kernel, mm_dtype=mm_dtype),
        out_shape=jax.ShapeDtypeStruct((B, S, 3 * D), mm_dtype),
        grid=(B, ns),
        in_specs=[
            pl.BlockSpec((1, block_s, D), lambda b, i: (b, i, 0)),
            const_spec((1, D)), const_spec((1, D)),                    # ln_attn gamma/beta
            const_spec((D, 3 * D)), const_spec((1, 3 * D)),            # wqkv, bqkv
        ],
        out_specs=pl.BlockSpec((1, block_s, 3 * D), lambda b, i: (b, i, 0)),
        compiler_params=pltpu.CompilerParams(
            dimension_semantics=("parallel", "parallel"),
            vmem_limit_bytes=vmem_limit_bytes),
    )(x, params["ga"], params["ba"], wqkv, bqkv)

    # Head-major relayout done once, outside the hot loop (pure XLA layout plumbing).
    qkv_h = qkv.reshape(B, S, 3, heads, dh).transpose(2, 0, 3, 1, 4)   # (3, B, H, S, dh)
    q_h, k_h, v_h = qkv_h[0], qkv_h[1], qkv_h[2]

    # ---- 2) flash attention over KV tiles + output projection + residual ----
    x1 = pl.pallas_call(
        partial(_attention_kernel, heads=heads, scale=1.0 / math.sqrt(dh),
                mm_dtype=mm_dtype, approx_recip=approx_recip),
        out_shape=jax.ShapeDtypeStruct((B, S, D), f32),
        grid=(B, nq, nk),
        in_specs=[
            pl.BlockSpec((1, block_q, D), lambda b, qi, ki: (b, qi, 0)),              # x (residual)
            pl.BlockSpec((1, heads, block_q, dh), lambda b, qi, ki: (b, 0, qi, 0)),   # Q
            kv_spec((1, heads, block_k, dh), lambda b, qi, ki: (b, 0, ki, 0)),        # K
            kv_spec((1, heads, block_k, dh), lambda b, qi, ki: (b, 0, ki, 0)),        # V
            const_spec((heads, dh, D)), const_spec((1, D)),                           # wo, bo
        ],
        out_specs=pl.BlockSpec((1, block_q, D), lambda b, qi, ki: (b, qi, 0)),
        scratch_shapes=[
            pltpu.VMEM((heads, block_q), f32),        # m (running max, lane-dense)
            pltpu.VMEM((heads, block_q), f32),        # l (running sum, lane-dense)
            pltpu.VMEM((heads, block_q, dh), f32),    # acc (running PV)
        ],
        compiler_params=pltpu.CompilerParams(
            dimension_semantics=("parallel", "parallel", "arbitrary"),
            vmem_limit_bytes=vmem_limit_bytes),
    )(x, q_h, k_h, v_h, wo_h, params["bo"])

    # ---- 3) LN_ff + FF streamed over R tiles + residual ----
    out = pl.pallas_call(
        partial(_ffn_kernel, mm_dtype=mm_dtype),
        out_shape=jax.ShapeDtypeStruct((B, S, D), f32),
        grid=(B, ns, nr),
        in_specs=[
            pl.BlockSpec((1, block_s, D), lambda b, i, r: (b, i, 0)),   # x1
            const_spec((1, D)), const_spec((1, D)),                     # ln_ff gamma/beta
            pl.BlockSpec((D, block_r), lambda b, i, r: (0, r)),         # w1 (R-streamed)
            pl.BlockSpec((1, block_r), lambda b, i, r: (0, r)),         # b1
            pl.BlockSpec((block_r, D), lambda b, i, r: (r, 0)),         # w2 (R-streamed)
            const_spec((1, D)),                                         # b2
        ],
        out_specs=pl.BlockSpec((1, block_s, D), lambda b, i, r: (b, i, 0)),
        scratch_shapes=[
            pltpu.VMEM((block_s, D), mm_dtype),   # LN_ff(x1), computed once per row tile
            pltpu.VMEM((block_s, D), f32),        # FF accumulator over R tiles
        ],
        compiler_params=pltpu.CompilerParams(
            dimension_semantics=("parallel", "parallel", "arbitrary"),
            vmem_limit_bytes=vmem_limit_bytes),
    )(x1, params["gf"], params["bf"], w1, params["b1"], w2, params["b2"])
    return out


def transformer_layer(x, params, *, heads: int, block_q=None, block_k=None,
                      block_s=None, block_r=None, mm_dtype=jnp.bfloat16,
                      approx_recip=None, single_buffer_weights=True,
                      kv_buffer_count=None, vmem_limit_bytes=48 * 1024 * 1024):
    """x: (B, S, D) float32.  params: dict of (in, out)-layout weights/biases.

    Tuning notes: v6e -> block_q=block_k=256, vmem_limit_bytes ~100 MiB;
    v7x  -> keep block_k<=128 and vmem_limit_bytes <= ~56 MiB (64 MiB/TC);
    v5e  -> defaults (128 tiles) with bf16 matmul operands.
    """
    B, S, D = x.shape
    assert D % heads == 0
    R = params["w1"].shape[1]

    block_q = min(S, 128) if block_q is None else block_q
    block_k = min(S, 128) if block_k is None else block_k
    block_s = min(S, 256) if block_s is None else block_s
    block_r = min(R, 512) if block_r is None else block_r
    assert S % block_q == 0 and S % block_k == 0 and S % block_s == 0 and R % block_r == 0
    if approx_recip is None:
        approx_recip = (mm_dtype != jnp.float32)

    kwargs = dict(heads=heads, block_q=block_q, block_k=block_k, block_s=block_s,
                  block_r=block_r, mm_dtype=mm_dtype, approx_recip=approx_recip,
                  kv_buffer_count=kv_buffer_count, vmem_limit_bytes=vmem_limit_bytes)
    if single_buffer_weights:
        try:
            return _forward(x, params, single_buffer_weights=True, **kwargs)
        except Exception:
            # pl.Buffered(1) / pipeline_mode not supported by this JAX build ->
            # fall back to default double-buffered weight specs (correctness identical).
            pass
    return _forward(x, params, single_buffer_weights=False, **kwargs)


# --------------------------------------------------------------------------- #
# Pure-JAX reference (mirrors the PyTorch forward, eval mode)                 #
# --------------------------------------------------------------------------- #
def transformer_layer_ref(x, p, *, heads: int):
    B, S, D = x.shape
    dh = D // heads

    a = _layer_norm(x, p["ga"], p["ba"])
    q = a @ p["wq"] + p["bq"]
    k = a @ p["wk"] + p["bk"]
    v = a @ p["wv"] + p["bv"]

    def split(t):  # (B,S,D) -> (B,H,S,dh)
        return t.reshape(B, S, heads, dh).transpose(0, 2, 1, 3)

    qh, kh, vh = split(q), split(k), split(v)
    s = jnp.einsum("bhqd,bhkd->bhqk", qh, kh) / math.sqrt(dh)
    pmat = jax.nn.softmax(s, axis=-1)
    o = jnp.einsum("bhqk,bhkd->bhqd", pmat, vh)
    o = o.transpose(0, 2, 1, 3).reshape(B, S, D)
    o = o @ p["wo"] + p["bo"]
    x = x + o
    f = _layer_norm(x, p["gf"], p["bf"])
    h1 = f @ p["w1"] + p["b1"]
    h1 = h1 * jax.nn.sigmoid(h1)
    return x + (h1 @ p["w2"] + p["b2"])


def init_params(key, dims, rate):
    ks = jax.random.split(key, 12)
    R = dims * rate
    s = 0.05
    return {
        "wq": s * jax.random.normal(ks[0], (dims, dims), jnp.float32),
        "bq": s * jax.random.normal(ks[1], (1, dims), jnp.float32),
        "wk": s * jax.random.normal(ks[2], (dims, dims), jnp.float32),
        "bk": s * jax.random.normal(ks[3], (1, dims), jnp.float32),
        "wv": s * jax.random.normal(ks[4], (dims, dims), jnp.float32),
        "bv": s * jax.random.normal(ks[5], (1, dims), jnp.float32),
        "wo": s * jax.random.normal(ks[6], (dims, dims), jnp.float32),
        "bo": s * jax.random.normal(ks[7], (1, dims), jnp.float32),
        "ga": jnp.ones((1, dims), jnp.float32),
        "ba": jnp.zeros((1, dims), jnp.float32),
        "gf": jnp.ones((1, dims), jnp.float32),
        "bf": jnp.zeros((1, dims), jnp.float32),
        "w1": s * jax.random.normal(ks[8], (dims, R), jnp.float32),
        "b1": s * jax.random.normal(ks[9], (1, R), jnp.float32),
        "w2": s * jax.random.normal(ks[10], (R, dims), jnp.float32),
        "b2": s * jax.random.normal(ks[11], (1, dims), jnp.float32),
    }


if __name__ == "__main__":
    HEADS, DIMS, RATE = 4, 64, 4          # dh=16, R=256
    B, S = 2, 16                          # 2x2 flash tiles, 2 FF R-tiles below

    key = jax.random.PRNGKey(0)
    kx, kp = jax.random.split(key)
    x = jax.random.normal(kx, (B, S, DIMS), jnp.float32)
    params = init_params(kp, DIMS, RATE)

    ref = transformer_layer_ref(x, params, heads=HEADS)

    # f32 matmul path (exact correctness check) — exercises the multi-tile flash loop
    # and the R-streamed feed-forward accumulation.
    out = transformer_layer(x, params, heads=HEADS, block_q=8, block_k=8,
                            block_s=8, block_r=128, mm_dtype=jnp.float32)
    out = jax.block_until_ready(out)
    np.testing.assert_allclose(np.asarray(out), np.asarray(ref), rtol=1e-4, atol=1e-4)

    # bf16 matmul operands + f32 accumulation (MXU fast path), looser tolerance.
    out_bf16 = transformer_layer(x, params, heads=HEADS, block_q=8, block_k=8,
                                 block_s=8, block_r=128, mm_dtype=jnp.bfloat16)
    out_bf16 = jax.block_until_ready(out_bf16)
    np.testing.assert_allclose(np.asarray(out_bf16), np.asarray(ref),
                               rtol=1e-1, atol=1e-1)

    print("KERNEL_OK")
</pallas_src>

<mosaic_0001>
module attributes {stable_mosaic.version = 11 : i64} {
  func.func @_qkv_proj_kernel(%arg0: i32, %arg1: i32, %arg2: memref<1x8x64xf32, #tpu.memory_space<vmem>>, %arg3: memref<1x64xf32, #tpu.memory_space<vmem>>, %arg4: memref<1x64xf32, #tpu.memory_space<vmem>>, %arg5: memref<64x192xf32, #tpu.memory_space<vmem>>, %arg6: memref<1x192xf32, #tpu.memory_space<vmem>>, %arg7: memref<1x8x192xf32, #tpu.memory_space<vmem>>) attributes {dimension_semantics = [#tpu.dimension_semantics<parallel>, #tpu.dimension_semantics<parallel>], iteration_bounds = array<i64: 2, 2>, scalar_prefetch = 0 : i64, scratch_operands = 0 : i64, tpu.core_type = #tpu.core_type<tc>, window_params = [{transform_indices = @transform_0, window_bounds = array<i64: 1, 8, 64>}, {pipeline_mode = #tpu.pipeline_mode<synchronous>, transform_indices = @transform_1, window_bounds = array<i64: 1, 64>}, {pipeline_mode = #tpu.pipeline_mode<synchronous>, transform_indices = @transform_2, window_bounds = array<i64: 1, 64>}, {pipeline_mode = #tpu.pipeline_mode<synchronous>, transform_indices = @transform_3, window_bounds = array<i64: 64, 192>}, {pipeline_mode = #tpu.pipeline_mode<synchronous>, transform_indices = @transform_4, window_bounds = array<i64: 1, 192>}, {transform_indices = @transform_5, window_bounds = array<i64: 1, 8, 192>}]} {
    %c0 = arith.constant 0 : index
    %c0_0 = arith.constant 0 : index
    %c0_1 = arith.constant 0 : index
    %0 = vector.load %arg2[%c0, %c0_0, %c0_1] : memref<1x8x64xf32, #tpu.memory_space<vmem>>, vector<1x8x64xf32>
    %1 = vector.shape_cast %0 : vector<1x8x64xf32> to vector<8x64xf32>
    %c0_2 = arith.constant 0 : index
    %c0_3 = arith.constant 0 : index
    %2 = vector.load %arg3[%c0_2, %c0_3] : memref<1x64xf32, #tpu.memory_space<vmem>>, vector<1x64xf32>
    %c0_4 = arith.constant 0 : index
    %c0_5 = arith.constant 0 : index
    %3 = vector.load %arg4[%c0_4, %c0_5] : memref<1x64xf32, #tpu.memory_space<vmem>>, vector<1x64xf32>
    %cst = arith.constant dense<0.000000e+00> : vector<8xf32>
    %4 = vector.multi_reduction <add>, %1, %cst [1] : vector<8x64xf32> to vector<8xf32>
    %5 = vector.shape_cast %4 : vector<8xf32> to vector<8x1xf32>
    %cst_6 = arith.constant 6.400000e+01 : f32
    %6 = vector.broadcast %cst_6 : f32 to vector<8x1xf32>
    %7 = arith.divf %5, %6 : vector<8x1xf32>
    %8 = vector.broadcast %7 : vector<8x1xf32> to vector<8x64xf32>
    %9 = arith.subf %1, %8 : vector<8x64xf32>
    %10 = arith.mulf %9, %9 : vector<8x64xf32>
    %cst_7 = arith.constant dense<0.000000e+00> : vector<8xf32>
    %11 = vector.multi_reduction <add>, %10, %cst_7 [1] : vector<8x64xf32> to vector<8xf32>
    %12 = vector.shape_cast %11 : vector<8xf32> to vector<8x1xf32>
    %cst_8 = arith.constant 6.400000e+01 : f32
    %13 = vector.broadcast %cst_8 : f32 to vector<8x1xf32>
    %14 = arith.divf %12, %13 : vector<8x1xf32>
    %15 = vector.broadcast %7 : vector<8x1xf32> to vector<8x64xf32>
    %16 = arith.subf %1, %15 : vector<8x64xf32>
    %cst_9 = arith.constant 9.99999974E-6 : f32
    %17 = vector.broadcast %cst_9 : f32 to vector<8x1xf32>
    %18 = arith.addf %14, %17 : vector<8x1xf32>
    %19 = math.rsqrt %18 : vector<8x1xf32>
    %20 = vector.broadcast %19 : vector<8x1xf32> to vector<8x64xf32>
    %21 = arith.mulf %16, %20 : vector<8x64xf32>
    %22 = vector.broadcast %2 : vector<1x64xf32> to vector<8x64xf32>
    %23 = arith.mulf %21, %22 : vector<8x64xf32>
    %24 = vector.broadcast %3 : vector<1x64xf32> to vector<8x64xf32>
    %25 = arith.addf %23, %24 : vector<8x64xf32>
    %c0_10 = arith.constant 0 : index
    %c0_11 = arith.constant 0 : index
    %26 = vector.load %arg5[%c0_10, %c0_11] : memref<64x192xf32, #tpu.memory_space<vmem>>, vector<64x192xf32>
    %cst_12 = arith.constant dense<0.000000e+00> : vector<8x192xf32>
    %27 = tpu.matmul %25, %26, %cst_12 {dimension_numbers = #tpu.dot_dimension_numbers<[1], [0], [0], [1], [0, 0, 1, 1], [], []>} : vector<8x64xf32>, vector<64x192xf32>, vector<8x192xf32> -> vector<8x192xf32>
    %c0_13 = arith.constant 0 : index
    %c0_14 = arith.constant 0 : index
    %28 = vector.load %arg6[%c0_13, %c0_14] : memref<1x192xf32, #tpu.memory_space<vmem>>, vector<1x192xf32>
    %29 = vector.broadcast %28 : vector<1x192xf32> to vector<8x192xf32>
    %30 = arith.addf %27, %29 : vector<8x192xf32>
    %c0_15 = arith.constant 0 : index
    %c0_16 = arith.constant 0 : index
    %c0_17 = arith.constant 0 : index
    %31 = vector.load %arg7[%c0_15, %c0_16, %c0_17] : memref<1x8x192xf32, #tpu.memory_space<vmem>>, vector<1x8x192xf32>
    %32 = vector.shape_cast %31 : vector<1x8x192xf32> to vector<8x192xf32>
    %33 = vector.shape_cast %30 : vector<8x192xf32> to vector<1x8x192xf32>
    tpu.vector_store %arg7[%c0_15, %c0_16, %c0_17], %33 {strides = array<i32>} : memref<1x8x192xf32, #tpu.memory_space<vmem>>, vector<1x8x192xf32>,
    return
  }
  func.func @transform_0(%arg0: i32, %arg1: i32) -> (i32, i32, i32) {
    %c0_i32 = arith.constant 0 : i32
    %c0_i32_0 = arith.constant 0 : i32
    return %arg0, %arg1, %c0_i32 : i32, i32, i32
  }
  func.func @transform_1(%arg0: i32, %arg1: i32) -> (i32, i32) {
    %c0_i32 = arith.constant 0 : i32
    %c0_i32_0 = arith.constant 0 : i32
    %c0_i32_1 = arith.constant 0 : i32
    return %c0_i32, %c0_i32_0 : i32, i32
  }
  func.func @transform_2(%arg0: i32, %arg1: i32) -> (i32, i32) {
    %c0_i32 = arith.constant 0 : i32
    %c0_i32_0 = arith.constant 0 : i32
    %c0_i32_1 = arith.constant 0 : i32
    return %c0_i32, %c0_i32_0 : i32, i32
  }
  func.func @transform_3(%arg0: i32, %arg1: i32) -> (i32, i32) {
    %c0_i32 = arith.constant 0 : i32
    %c0_i32_0 = arith.constant 0 : i32
    %c0_i32_1 = arith.constant 0 : i32
    return %c0_i32, %c0_i32_0 : i32, i32
  }
  func.func @transform_4(%arg0: i32, %arg1: i32) -> (i32, i32) {
    %c0_i32 = arith.constant 0 : i32
    %c0_i32_0 = arith.constant 0 : i32
    %c0_i32_1 = arith.constant 0 : i32
    return %c0_i32, %c0_i32_0 : i32, i32
  }
  func.func @transform_5(%arg0: i32, %arg1: i32) -> (i32, i32, i32) {
    %c0_i32 = arith.constant 0 : i32
    %c0_i32_0 = arith.constant 0 : i32
    return %arg0, %arg1, %c0_i32 : i32, i32, i32
  }
}

module attributes {stable_mosaic.version = 11 : i64} {
  func.func @_qkv_proj_kernel(%arg0: i32, %arg1: i32, %arg2: memref<1x8x64xf32, #tpu.memory_space<vmem>>, %arg3: memref<1x64xf32, #tpu.memory_space<vmem>>, %arg4: memref<1x64xf32, #tpu.memory_space<vmem>>, %arg5: memref<64x192xf32, #tpu.memory_space<vmem>>, %arg6: memref<1x192xf32, #tpu.memory_space<vmem>>, %arg7: memref<1x8x192xf32, #tpu.memory_space<vmem>>) attributes {dimension_semantics = [#tpu.dimension_semantics<parallel>, #tpu.dimension_semantics<parallel>], iteration_bounds = array<i64: 2, 2>, scalar_prefetch = 0 : i64, scratch_operands = 0 : i64, tpu.core_type = #tpu.core_type<tc>, window_params = [{transform_indices = @transform_0, window_bounds = array<i64: 1, 8, 64>}, {pipeline_mode = #tpu.pipeline_mode<synchronous>, transform_indices = @transform_1, window_bounds = array<i64: 1, 64>}, {pipeline_mode = #tpu.pipeline_mode<synchronous>, transform_indices = @transform_2, window_bounds = array<i64: 1, 64>}, {pipeline_mode = #tpu.pipeline_mode<synchronous>, transform_indices = @transform_3, window_bounds = array<i64: 64, 192>}, {pipeline_mode = #tpu.pipeline_mode<synchronous>, transform_indices = @transform_4, window_bounds = array<i64: 1, 192>}, {transform_indices = @transform_5, window_bounds = array<i64: 1, 8, 192>}]} {
    %c0 = arith.constant 0 : index
    %c0_0 = arith.constant 0 : index
    %c0_1 = arith.constant 0 : index
    %0 = vector.load %arg2[%c0, %c0_0, %c0_1] : memref<1x8x64xf32, #tpu.memory_space<vmem>>, vector<1x8x64xf32>
    %1 = vector.shape_cast %0 : vector<1x8x64xf32> to vector<8x64xf32>
    %c0_2 = arith.constant 0 : index
    %c0_3 = arith.constant 0 : index
    %2 = vector.load %arg3[%c0_2, %c0_3] : memref<1x64xf32, #tpu.memory_space<vmem>>, vector<1x64xf32>
    %c0_4 = arith.constant 0 : index
    %c0_5 = arith.constant 0 : index
    %3 = vector.load %arg4[%c0_4, %c0_5] : memref<1x64xf32, #tpu.memory_space<vmem>>, vector<1x64xf32>
    %cst = arith.constant dense<0.000000e+00> : vector<8xf32>
    %4 = vector.multi_reduction <add>, %1, %cst [1] : vector<8x64xf32> to vector<8xf32>
    %5 = vector.shape_cast %4 : vector<8xf32> to vector<8x1xf32>
    %cst_6 = arith.constant 6.400000e+01 : f32
    %6 = vector.broadcast %cst_6 : f32 to vector<8x1xf32>
    %7 = arith.divf %5, %6 : vector<8x1xf32>
    %8 = vector.broadcast %7 : vector<8x1xf32> to vector<8x64xf32>
    %9 = arith.subf %1, %8 : vector<8x64xf32>
    %10 = arith.mulf %9, %9 : vector<8x64xf32>
    %cst_7 = arith.constant dense<0.000000e+00> : vector<8xf32>
    %11 = vector.multi_reduction <add>, %10, %cst_7 [1] : vector<8x64xf32> to vector<8xf32>
    %12 = vector.shape_cast %11 : vector<8xf32> to vector<8x1xf32>
    %cst_8 = arith.constant 6.400000e+01 : f32
    %13 = vector.broadcast %cst_8 : f32 to vector<8x1xf32>
    %14 = arith.divf %12, %13 : vector<8x1xf32>
    %15 = vector.broadcast %7 : vector<8x1xf32> to vector<8x64xf32>
    %16 = arith.subf %1, %15 : vector<8x64xf32>
    %cst_9 = arith.constant 9.99999974E-6 : f32
    %17 = vector.broadcast %cst_9 : f32 to vector<8x1xf32>
    %18 = arith.addf %14, %17 : vector<8x1xf32>
    %19 = math.rsqrt %18 : vector<8x1xf32>
    %20 = vector.broadcast %19 : vector<8x1xf32> to vector<8x64xf32>
    %21 = arith.mulf %16, %20 : vector<8x64xf32>
    %22 = vector.broadcast %2 : vector<1x64xf32> to vector<8x64xf32>
    %23 = arith.mulf %21, %22 : vector<8x64xf32>
    %24 = vector.broadcast %3 : vector<1x64xf32> to vector<8x64xf32>
    %25 = arith.addf %23, %24 : vector<8x64xf32>
    %c0_10 = arith.constant 0 : index
    %c0_11 = arith.constant 0 : index
    %26 = vector.load %arg5[%c0_10, %c0_11] : memref<64x192xf32, #tpu.memory_space<vmem>>, vector<64x192xf32>
    %cst_12 = arith.constant dense<0.000000e+00> : vector<8x192xf32>
    %27 = tpu.matmul %25, %26, %cst_12 {dimension_numbers = #tpu.dot_dimension_numbers<[1], [0], [0], [1], [0, 0, 1, 1], [], []>} : vector<8x64xf32>, vector<64x192xf32>, vector<8x192xf32> -> vector<8x192xf32>
    %c0_13 = arith.constant 0 : index
    %c0_14 = arith.constant 0 : index
    %28 = vector.load %arg6[%c0_13, %c0_14] : memref<1x192xf32, #tpu.memory_space<vmem>>, vector<1x192xf32>
    %29 = vector.broadcast %28 : vector<1x192xf32> to vector<8x192xf32>
    %30 = arith.addf %27, %29 : vector<8x192xf32>
    %c0_15 = arith.constant 0 : index
    %c0_16 = arith.constant 0 : index
    %c0_17 = arith.constant 0 : index
    %31 = vector.load %arg7[%c0_15, %c0_16, %c0_17] : memref<1x8x192xf32, #tpu.memory_space<vmem>>, vector<1x8x192xf32>
    %32 = vector.shape_cast %31 : vector<1x8x192xf32> to vector<8x192xf32>
    %33 = vector.shape_cast %30 : vector<8x192xf32> to vector<1x8x192xf32>
    tpu.vector_store %arg7[%c0_15, %c0_16, %c0_17], %33 {strides = array<i32>} : memref<1x8x192xf32, #tpu.memory_space<vmem>>, vector<1x8x192xf32>,
    return
  }
  func.func @transform_0(%arg0: i32, %arg1: i32) -> (i32, i32, i32) {
    %c0_i32 = arith.constant 0 : i32
    %c0_i32_0 = arith.constant 0 : i32
    return %arg0, %arg1, %c0_i32 : i32, i32, i32
  }
  func.func @transform_1(%arg0: i32, %arg1: i32) -> (i32, i32) {
    %c0_i32 = arith.constant 0 : i32
    %c0_i32_0 = arith.constant 0 : i32
    %c0_i32_1 = arith.constant 0 : i32
    return %c0_i32, %c0_i32_0 : i32, i32
  }
  func.func @transform_2(%arg0: i32, %arg1: i32) -> (i32, i32) {
    %c0_i32 = arith.constant 0 : i32
    %c0_i32_0 = arith.constant 0 : i32
    %c0_i32_1 = arith.constant 0 : i32
    return %c0_i32, %c0_i32_0 : i32, i32
  }
  func.func @transform_3(%arg0: i32, %arg1: i32) -> (i32, i32) {
    %c0_i32 = arith.constant 0 : i32
    %c0_i32_0 = arith.constant 0 : i32
    %c0_i32_1 = arith.constant 0 : i32
    return %c0_i32, %c0_i32_0 : i32, i32
  }
  func.func @transform_4(%arg0: i32, %arg1: i32) -> (i32, i32) {
    %c0_i32 = arith.constant 0 : i32
    %c0_i32_0 = arith.constant 0 : i32
    %c0_i32_1 = arith.constant 0 : i32
    return %c0_i32, %c0_i32_0 : i32, i32
  }
  func.func @transform_5(%arg0: i32, %arg1: i32) -> (i32, i32, i32) {
    %c0_i32 = arith.constant 0 : i32
    %c0_i32_0 = arith.constant 0 : i32
    return %arg0, %arg1, %c0_i32 : i32, i32, i32
  }
}

</mosaic_0001>

<llo_original>
// kernel: tpu_custom_call.1
$region0: #{tpu_custom_call.1}
  #allocation0 [shape = 'u32[]', space=smem, size = 0x4, offset = 0x4, fixed_abs, tag = 'smem constant byte address 0x4 - core index']
  #allocation1 [shape = 'u32[72,128]{1,0:T(1,128)}', space=vmem, size = 0x9000, scoped, tag = 'internal scratch']
  %s0 = inlined_call_operand.hbm [shape: f32[2,16,64], index: 0, kind: input, shape index: {}]
  %s1 = inlined_call_operand.hbm [shape: f32[1,64], index: 1, kind: input, shape index: {}]
  %s2 = inlined_call_operand.vmem [shape: f32[1,64], index: 2, kind: input, shape index: {}]
  %s3 = inlined_call_operand.hbm [shape: f32[64,192], index: 3, kind: input, shape index: {}]
  %s4 = inlined_call_operand.vmem [shape: f32[1,192], index: 4, kind: input, shape index: {}]
  %s5 = inlined_call_operand.hbm [shape: f32[2,16,192], index: 5, kind: output, shape index: {}]
  %s6 = sld [smem:[#allocation0]]
  $region65: #{tpu_custom_call.1} parent=0
    _
  %s8 = ssub.s32 1, %s6
  %s9 = scalar_select 0, %s8, %s6
  $region1: #{tpu_custom_call.1} parent=0
    #allocation2 [shape = 'u8[8192]{0}', space=vmem, size = 0x2000, scoped, tag = 'input window, operand 0']
    #allocation3 [shape = 's32[2]{0}', space=sflag, size = 0x8, scoped, tag = 'scoped memory for tpu_custom_call.1']
    #allocation4 [shape = 's32[2]{0}', space=sflag, size = 0x8, scoped, tag = 'scoped memory for tpu_custom_call.1']
    #allocation5 [shape = 'u8[512]{0}', space=vmem, size = 0x400, scoped, tag = 'input window, operand 1, single buffered']
    #allocation6 [shape = 's32[1]{0}', space=sflag, size = 0x4, scoped, tag = 'scoped memory for tpu_custom_call.1']
    #allocation7 [shape = 'u8[65536]{0}', space=vmem, size = 0x10000, scoped, tag = 'input window, operand 3, single buffered']
    #allocation8 [shape = 'u8[16384]{0}', space=vmem, size = 0x4000, scoped, tag = 'output window, operand 0']
    %10 = vsyncpa [#allocation3], 0
    %s11 = scalar_lea.sflag [#allocation3], 1
    %12 = vsyncpa %s11, 0
    %13 = vsyncpa [#allocation6], 0
    %14 = vsyncpa [#allocation4], 0
    %s15 = scalar_lea.sflag [#allocation4], 1
    %16 = vsyncpa %s15, 0
    loop: start=0, step=1, limit=6
    $region2: #{tpu_custom_call.1} parent=1 // loop_pre_header
      _
    $region3: #{tpu_custom_call.1} parent=1 // loop_header
      %s18 = sphi 0, %s22
      %p19 = scmp.ge.s32.totalorder %s18, 6
      %s25 = sphi 0, %s37
      %s26 = sphi 0, %s33
      %s27 = sphi 0, %s25
      %s28 = sphi 0, %s26
      %s29 = sphi 0, %s27
      %s30 = sphi 0, %s28
      %s42 = sphi 0, %s44
      %s45 = sphi 0, %s42
      %s46 = sphi 0, %s45
      %s62 = sphi 0, %s46
      %s66 = sphi 0, %s66
      %s68 = sphi 0, %s66
      %s69 = sphi 0, %s68
      %s83 = sphi 0, %s69
      %s87 = sphi 0, %s87
      %s89 = sphi 0, %s87
      %s90 = sphi 0, %s89
      %s104 = sphi 0, %s90
      %s108 = sphi 0, %s108
      %s110 = sphi 0, %s108
      %s111 = sphi 0, %s110
      %s125 = sphi 0, %s111
      %s129 = sphi 0, %s129
      %s131 = sphi 0, %s129
      %s132 = sphi 0, %s131
      %s146 = sphi 0, %s132
      %s154 = sphi 0, %s156
      %s157 = sphi 0, %s154
      %s158 = sphi 0, %s157
      %s174 = sphi 0, %s158
    $region4: #{tpu_custom_call.1} parent=1 // loop_header_branch
      %21 = sbr.rel (%p19) target = $region8
    $region5: #{tpu_custom_call.1} parent=1 // loop_body
      %s23 = ssub.s32 %s18, 1
      %s24 = ssub.s32 %s18, 2
      %s31 = sadd.s32 1, %s26
      %p32 = scmp.ge.s32.totalorder %s31, 2
      %s33 = scalar_select %p32, 0, %s31
      %s34 = sadd.s32 1, %s25
      %s35 = scalar_select %p32, %s34, %s25
      %p36 = scmp.ge.s32.totalorder %s35, 2
      %s37 = scalar_select %p36, 0, %s35
      %s38 = ssub.s32 %s25, %s37
      %s39 = ssub.s32 %s26, %s33
      %s40 = sor.u32 %s38, %s39
      %p41 = scmp.eq.s32.totalorder %s40, 0
      %s43 = sadd.s32 %s42, 1
      %s44 = scalar_select %p41, %s42, %s43
      %p47 = pneg %p41
      %p48 = scmp.eq.s32.totalorder %s18, 3
      %p49 = por %p47, %p48
      %p50 = scmp.ne.s32.totalorder %s42, %s45
      %p51 = scmp.eq.s32.totalorder %s18, 0
      %p52 = por %p50, %p51
      %p53 = scmp.ne.s32.totalorder %s42, %s45
      %p54 = scmp.eq.s32.totalorder %s23, 3
      %p55 = por %p53, %p54
      %p56 = scmp.ne.s32.totalorder %s45, %s46
      %p57 = scmp.eq.s32.totalorder %s23, 0
      %p58 = por %p56, %p57
      %p59 = scmp.ne.s32.totalorder %s45, %s46
      %p60 = scmp.eq.s32.totalorder %s24, 3
      %p61 = por %p59, %p60
      %p63 = scmp.ne.s32.totalorder %s46, %s62
      %p64 = scmp.eq.s32.totalorder %s24, 0
      %p65 = por %p63, %p64
      %s67 = sadd.s32 %s66, 1
      %p70 = scmp.eq.s32.totalorder %s18, 3
      %p71 = scmp.ne.s32.totalorder %s66, %s68
      %p72 = scmp.eq.s32.totalorder %s18, 0
      %p73 = por %p71, %p72
      %p74 = scmp.ne.s32.totalorder %s66, %s68
      %p75 = scmp.eq.s32.totalorder %s23, 3
      %p76 = por %p74, %p75
      %p77 = scmp.ne.s32.totalorder %s68, %s69
      %p78 = scmp.eq.s32.totalorder %s23, 0
      %p79 = por %p77, %p78
      %p80 = scmp.ne.s32.totalorder %s68, %s69
      %p81 = scmp.eq.s32.totalorder %s24, 3
      %p82 = por %p80, %p81
      %p84 = scmp.ne.s32.totalorder %s69, %s83
      %p85 = scmp.eq.s32.totalorder %s24, 0
      %p86 = por %p84, %p85
      %s88 = sadd.s32 %s87, 1
      %p91 = scmp.eq.s32.totalorder %s18, 3
      %p92 = scmp.ne.s32.totalorder %s87, %s89
      %p93 = scmp.eq.s32.totalorder %s18, 0
      %p94 = por %p92, %p93
      %p95 = scmp.ne.s32.totalorder %s87, %s89
      %p96 = scmp.eq.s32.totalorder %s23, 3
      %p97 = por %p95, %p96
      %p98 = scmp.ne.s32.totalorder %s89, %s90
      %p99 = scmp.eq.s32.totalorder %s23, 0
      %p100 = por %p98, %p99
      %p101 = scmp.ne.s32.totalorder %s89, %s90
      %p102 = scmp.eq.s32.totalorder %s24, 3
      %p103 = por %p101, %p102
      %p105 = scmp.ne.s32.totalorder %s90, %s104
      %p106 = scmp.eq.s32.totalorder %s24, 0
      %p107 = por %p105, %p106
      %s109 = sadd.s32 %s108, 1
      %p112 = scmp.eq.s32.totalorder %s18, 3
      %p113 = scmp.ne.s32.totalorder %s108, %s110
      %p114 = scmp.eq.s32.totalorder %s18, 0
      %p115 = por %p113, %p114
      %p116 = scmp.ne.s32.totalorder %s108, %s110
      %p117 = scmp.eq.s32.totalorder %s23, 3
      %p118 = por %p116, %p117
      %p119 = scmp.ne.s32.totalorder %s110, %s111
      %p120 = scmp.eq.s32.totalorder %s23, 0
      %p121 = por %p119, %p120
      %p122 = scmp.ne.s32.totalorder %s110, %s111
      %p123 = scmp.eq.s32.totalorder %s24, 3
      %p124 = por %p122, %p123
      %p126 = scmp.ne.s32.totalorder %s111, %s125
      %p127 = scmp.eq.s32.totalorder %s24, 0
      %p128 = por %p126, %p127
      %s130 = sadd.s32 %s129, 1
      %p133 = scmp.eq.s32.totalorder %s18, 3
      %p134 = scmp.ne.s32.totalorder %s129, %s131
      %p135 = scmp.eq.s32.totalorder %s18, 0
      %p136 = por %p134, %p135
      %p137 = scmp.ne.s32.totalorder %s129, %s131
      %p138 = scmp.eq.s32.totalorder %s23, 3
      %p139 = por %p137, %p138
      %p140 = scmp.ne.s32.totalorder %s131, %s132
      %p141 = scmp.eq.s32.totalorder %s23, 0
      %p142 = por %p140, %p141
      %p143 = scmp.ne.s32.totalorder %s131, %s132
      %p144 = scmp.eq.s32.totalorder %s24, 3
      %p145 = por %p143, %p144
      %p147 = scmp.ne.s32.totalorder %s132, %s146
      %p148 = scmp.eq.s32.totalorder %s24, 0
      %p149 = por %p147, %p148
      %s150 = ssub.s32 %s25, %s37
      %s151 = ssub.s32 %s26, %s33
      %s152 = sor.u32 %s150, %s151
      %p153 = scmp.eq.s32.totalorder %s152, 0
      %s155 = sadd.s32 %s154, 1
      %s156 = scalar_select %p153, %s154, %s155
      %p159 = pneg %p153
      %p160 = scmp.eq.s32.totalorder %s18, 3
      %p161 = por %p159, %p160
      %p162 = scmp.ne.s32.totalorder %s154, %s157
      %p163 = scmp.eq.s32.totalorder %s18, 0
      %p164 = por %p162, %p163
      %p165 = scmp.ne.s32.totalorder %s154, %s157
      %p166 = scmp.eq.s32.totalorder %s23, 3
      %p167 = por %p165, %p166
      %p168 = scmp.ne.s32.totalorder %s157, %s158
      %p169 = scmp.eq.s32.totalorder %s23, 0
      %p170 = por %p168, %p169
      %p171 = scmp.ne.s32.totalorder %s157, %s158
      %p172 = scmp.eq.s32.totalorder %s24, 3
      %p173 = por %p171, %p172
      %p175 = scmp.ne.s32.totalorder %s158, %s174
      %p176 = scmp.eq.s32.totalorder %s24, 0
      %p177 = por %p175, %p176
      %p178 = scmp.le.s32.totalorder 1, %s18
      %p179 = scmp.lt.s32.totalorder %s18, 5
      %p180 = pnand %p178, %p179
      %p181 = pneg %p180
      // Predicated region
      $region9: #{tpu_custom_call.1} parent=5 // pred_check
        _
      $region10: #{tpu_custom_call.1} parent=5 // pred_check_branch
        %183 = sbr.rel (%p180) target = $region12
      $region11: #{tpu_custom_call.1} parent=5 // pred_region
        %s184 = ssub.s32 %s18, 1
        // Predicated region
        $region13: #{tpu_custom_call.1} parent=11 // pred_check
          %p185 = pneg %p79
        $region14: #{tpu_custom_call.1} parent=11 // pred_check_branch
          %187 = sbr.rel (%p185) target = $region16
        $region15: #{tpu_custom_call.1} parent=11 // pred_region
          %189 = vsyncadd [#allocation6], 0
          %s191 = sshll.u32 %s1, 4
          %s192 = int_to_ptr.hbm [resolvable:$true] %s191
          %s193 = sshll.u32 [#allocation5], 4
          %s194 = int_to_ptr.vmem [resolvable:$true] %s193
          %196 = dma.hbm_to_vmem [thread:$0]  %s192, 16, %s194, [#allocation6]
        $region16: #{tpu_custom_call.1} parent=11 // pred_fallthru
          _
        // Predicated region
        $region17: #{tpu_custom_call.1} parent=11 // pred_check
          %p197 = pneg %p100
        $region18: #{tpu_custom_call.1} parent=11 // pred_check_branch
          %199 = sbr.rel (%p197) target = $region20
        $region19: #{tpu_custom_call.1} parent=11 // pred_region
          _
        $region20: #{tpu_custom_call.1} parent=11 // pred_fallthru
          _
        // Predicated region
        $region21: #{tpu_custom_call.1} parent=11 // pred_check
          %p200 = pneg %p121
        $region22: #{tpu_custom_call.1} parent=11 // pred_check_branch
          %202 = sbr.rel (%p200) target = $region24
        $region23: #{tpu_custom_call.1} parent=11 // pred_region
          %204 = vsyncadd [#allocation6], 0
          %s205 = sshll.u32 %s3, 4
          %s206 = int_to_ptr.hbm [resolvable:$true] %s205
          %s207 = sshll.u32 [#allocation7], 4
          %s208 = int_to_ptr.vmem [resolvable:$true] %s207
          %213 = dma.hbm_to_vmem [thread:$0]  %s206, 2048, %s208, [#allocation6], 256, 256, 16
        $region24: #{tpu_custom_call.1} parent=11 // pred_fallthru
          _
        // Predicated region
        $region25: #{tpu_custom_call.1} parent=11 // pred_check
          %p214 = pneg %p142
        $region26: #{tpu_custom_call.1} parent=11 // pred_check_branch
          %216 = sbr.rel (%p214) target = $region28
        $region27: #{tpu_custom_call.1} parent=11 // pred_region
          _
        $region28: #{tpu_custom_call.1} parent=11 // pred_fallthru
          _
      $region12: #{tpu_custom_call.1} parent=5 // pred_fallthru
        _
      %p217 = scmp.lt.s32.totalorder %s18, 4
      // Predicated region
      $region29: #{tpu_custom_call.1} parent=5 // pred_check
        %p218 = pneg %p217
      $region30: #{tpu_custom_call.1} parent=5 // pred_check_branch
        %220 = sbr.rel (%p218) target = $region32
      $region31: #{tpu_custom_call.1} parent=5 // pred_region
        // Predicated region
        $region33: #{tpu_custom_call.1} parent=31 // pred_check
          %p221 = pneg %p52
        $region34: #{tpu_custom_call.1} parent=31 // pred_check_branch
          %223 = sbr.rel (%p221) target = $region36
        $region35: #{tpu_custom_call.1} parent=31 // pred_region
          %s224 = sand.u32 %s42, 1
          %s225 = scalar_lea.sflag [#allocation3], %s224
          %s226 = sand.u32 %s42, 1
          %s227 = smul.addr %s226, 8
          %s228 = scalar_lea.vmem [#allocation2], %s227
          %230 = vsyncadd %s225, 0
          %s231 = smul.addr %s25, 2
          %s232 = sadd.s32 %s26, %s231
          %s233 = smul.addr %s232, 8
          %s234 = scalar_lea.hbm %s0, %s233
          %s236 = sshll.u32 %s234, 4
          %s237 = int_to_ptr.hbm [resolvable:$true] %s236
          %s238 = sshll.u32 %s228, 4
          %s239 = int_to_ptr.vmem [resolvable:$true] %s238
          %241 = dma.hbm_to_vmem [thread:$0]  %s237, 128, %s239, %s225
        $region36: #{tpu_custom_call.1} parent=31 // pred_fallthru
          _
      $region32: #{tpu_custom_call.1} parent=5 // pred_fallthru
        _
      %p242 = scmp.le.s32.totalorder 1, %s18
      %p243 = scmp.lt.s32.totalorder %s18, 5
      %p244 = pnand %p242, %p243
      %p245 = pneg %p244
      // Predicated region
      $region37: #{tpu_custom_call.1} parent=5 // pred_check
        _
      $region38: #{tpu_custom_call.1} parent=5 // pred_check_branch
        %247 = sbr.rel (%p244) target = $region40
      $region39: #{tpu_custom_call.1} parent=5 // pred_region
        %s248 = ssub.s32 %s18, 1
        %s249 = sand.u32 %s45, 1
        %s250 = scalar_lea.sflag [#allocation3], %s249
        %s251 = sand.u32 %s45, 1
        %s252 = smul.addr %s251, 8
        %s253 = scalar_lea.vmem [#allocation2], %s252
        // Predicated region
        $region41: #{tpu_custom_call.1} parent=39 // pred_check
          %p254 = pneg %p58
        $region42: #{tpu_custom_call.1} parent=39 // pred_check_branch
          %256 = sbr.rel (%p254) target = $region44
        $region43: #{tpu_custom_call.1} parent=39 // pred_region
          %258 = dma.done %s250, 128
        $region44: #{tpu_custom_call.1} parent=39 // pred_fallthru
          _
        // Predicated region
        $region45: #{tpu_custom_call.1} parent=39 // pred_check
          %p259 = pneg %p79
        $region46: #{tpu_custom_call.1} parent=39 // pred_check_branch
          %261 = sbr.rel (%p259) target = $region48
        $region47: #{tpu_custom_call.1} parent=39 // pred_region
          %263 = dma.done [#allocation6], 16
        $region48: #{tpu_custom_call.1} parent=39 // pred_fallthru
          _
        // Predicated region
        $region49: #{tpu_custom_call.1} parent=39 // pred_check
          %p264 = pneg %p121
        $region50: #{tpu_custom_call.1} parent=39 // pred_check_branch
          %266 = sbr.rel (%p264) target = $region52
        $region51: #{tpu_custom_call.1} parent=39 // pred_region
          %268 = dma.done [#allocation6], 2048
        $region52: #{tpu_custom_call.1} parent=39 // pred_fallthru
          _
        %s269 = sand.u32 %s45, 1
        %s270 = scalar_lea.sflag [#allocation3], %s269
        %s271 = sand.u32 %s45, 1
        %s272 = smul.addr %s271, 8
        %s273 = scalar_lea.vmem [#allocation2], %s272
        %p274 = pneg %p58
        %p275 = pneg %p55
        %p276 = pneg %p79
        %p277 = pneg %p76
        %p278 = pneg %p100
        %p279 = pneg %p97
        %p280 = pneg %p121
        %p281 = pneg %p118
        %p282 = pneg %p142
        %p283 = pneg %p139
        %p284 = pneg %p170
        %p285 = pneg %p167
        %s286 = sand.u32 %s157, 1
        %s287 = scalar_lea.sflag [#allocation4], %s286
        %s288 = sand.u32 %s157, 1
        %s289 = smul.addr %s288, 16
        %s290 = scalar_lea.vmem [#allocation8], %s289
        %v291 = vld [vmem:[%s253] sm:$0xff]
        %v292 = vld [vmem:[#allocation5] sm:$0x1]
        %v293 = vld [vmem:[%s2] sm:$0x1]
        %vm294 = vcmask 523264
        %v295 = vsel %vm294, %v291, 0.0
        %296 = vadd.xlane.f32.xlu0 %v295
        %v297 = vpop.xlane.xlu0 %296
        %v298 = vrcp.pop 64.0
        %v299 = vmul.f32 64.0, %v298
        %v300 = vsub.f32 1.0, %v299
        %v301 = vmul.f32 %v298, %v300
        %v302 = vadd.f32 %v298, %v301
        %vm303 = vweird.f32 %v298
        %v304 = vsel %vm303, %v298, %v302
        %v305 = vmul.f32 %v297, %v304
        %v306 = vsub.f32 %v291, %v305
        %v307 = vmul.f32 %v306, %v306
        %v308 = vsel %vm294, %v307, 0.0
        %309 = vadd.xlane.f32.xlu0 %v308
        %v310 = vpop.xlane.xlu0 %309
        %v311 = vmul.f32 %v310, %v304
        %v312 = vadd.f32 %v311, 1e-05
        %v313 = vrsqrt.pop %v312
        %v314 = vmul.f32 %v313, %v312
        %v315 = vmul.f32 %v314, %v313
        %v316 = vmul.f32 0.5, %v315
        %v317 = vsub.f32 1.5, %v316
        %v318 = vmul.f32 %v313, %v317
        %vm319 = vweird.f32 %v312
        %vm320 = vweird.f32 %v313
        %vm321 = vmor %vm319, %vm320
        %v322 = vsel %vm321, %v313, %v318
        %v323 = vmul.f32 %v306, %v322
        %v325 = vperm.slane %v292, 0
        %v327 = vmul.f32 %v323, %v325
        %v329 = vperm.slane %v293, 0
        %v331 = vadd.f32 %v327, %v329
        %v332 = vld [vmem:[#allocation7] sm:$0xff]
        %v333 = vld [vmem:[#allocation7 + $0x8] sm:$0xff]
        %v334 = vld [vmem:[#allocation7 + $0x10] sm:$0xff]
        %v335 = vld [vmem:[#allocation7 + $0x18] sm:$0xff]
        %v336 = vld [vmem:[#allocation7 + $0x20] sm:$0xff]
        %v337 = vld [vmem:[#allocation7 + $0x28] sm:$0xff]
        %v338 = vld [vmem:[#allocation7 + $0x30] sm:$0xff]
        %v339 = vld [vmem:[#allocation7 + $0x38] sm:$0xff]
        %v340 = vld [vmem:[#allocation7 + $0x40] sm:$0xff]
        %v341 = vld [vmem:[#allocation7 + $0x48] sm:$0xff]
        %v342 = vld [vmem:[#allocation7 + $0x50] sm:$0xff]
        %v343 = vld [vmem:[#allocation7 + $0x58] sm:$0xff]
        %v344 = vld [vmem:[#allocation7 + $0x60] sm:$0xff]
        %v345 = vld [vmem:[#allocation7 + $0x68] sm:$0xff]
        %v346 = vld [vmem:[#allocation7 + $0x70] sm:$0xff]
        %v347 = vld [vmem:[#allocation7 + $0x78] sm:$0xff]
        %v348 = vld [vmem:[%s4] sm:$0x3]
        %v350 = vperm.slane %v348, 0
        %v351 = vperm.slane %v348, 1
        %v355 = vsel %vm294, %v331, 0
        %357 = vmatpush.msra.mxu0 0.0
        %358 = vmatpush.msra.mxu0 0.0
        %359 = vmatpush.msra.mxu0 0.0
        %360 = vmatpush.msra.mxu0 0.0
        %361 = vmatpush.msra.mxu0 0.0
        %362 = vmatpush.msra.mxu0 0.0
        %363 = vmatpush.msra.mxu0 0.0
        %364 = vmatpush.msra.mxu0 0.0
        %365 = vmatpush.msra.mxu0 %v346
        %366 = vmatpush.msra.mxu0 %v344
        %367 = vmatpush.msra.mxu0 %v342
        %368 = vmatpush.msra.mxu0 %v340
        %369 = vmatpush.msra.mxu0 %v338
        %370 = vmatpush.msra.mxu0 %v336
        %371 = vmatpush.msra.mxu0 %v334
        %372 = vmatpush.msra.mxu0 %v332
        %373 = vmatmul.f32.gmra.mxu0 %v355
        %v374 = vpop.f32.mrf.mxu0
        %v375 = vadd.f32 %v350, %v374
        %376 = vdwg.mxu0
        %377 = vmatpush.msra.mxu0 0.0
        %378 = vmatpush.msra.mxu0 0.0
        %379 = vmatpush.msra.mxu0 0.0
        %380 = vmatpush.msra.mxu0 0.0
        %381 = vmatpush.msra.mxu0 0.0
        %382 = vmatpush.msra.mxu0 0.0
        %383 = vmatpush.msra.mxu0 0.0
        %384 = vmatpush.msra.mxu0 0.0
        %385 = vmatpush.msra.mxu0 %v347
        %386 = vmatpush.msra.mxu0 %v345
        %387 = vmatpush.msra.mxu0 %v343
        %388 = vmatpush.msra.mxu0 %v341
        %389 = vmatpush.msra.mxu0 %v339
        %390 = vmatpush.msra.mxu0 %v337
        %391 = vmatpush.msra.mxu0 %v335
        %392 = vmatpush.msra.mxu0 %v333
        %393 = vmatmul.f32.gmra.mxu0 %v355
        %v394 = vpop.f32.mrf.mxu0
        %v395 = vadd.f32 %v351, %v394
        %396 = vdwg.mxu0
        %397 = vst [vmem:[%s290] sm:$0xff] %v375
        %398 = vst.msk [vmem:[%s290 + $0x8] sm:$0xff] %vm294, %v395
        %s399 = sand.u32 %s157, 1
        %s400 = scalar_lea.sflag [#allocation4], %s399
        %s401 = sand.u32 %s157, 1
        %s402 = smul.addr %s401, 16
        %s403 = scalar_lea.vmem [#allocation8], %s402
        // Predicated region
        $region53: #{tpu_custom_call.1} parent=39 // pred_check
          %p404 = pneg %p167
        $region54: #{tpu_custom_call.1} parent=39 // pred_check_branch
          %406 = sbr.rel (%p404) target = $region56
        $region55: #{tpu_custom_call.1} parent=39 // pred_region
          %408 = vsyncadd %s400, 0
          %s409 = smul.addr %s28, 2
          %s410 = smul.addr %s27, 4
          %s411 = sadd.s32 %s409, %s410
          %s412 = smul.addr %s411, 8
          %s413 = scalar_lea.hbm %s5, %s412
          %s415 = sshll.u32 %s403, 4
          %s416 = int_to_ptr.vmem [resolvable:$true] %s415
          %s417 = sshll.u32 %s413, 4
          %s418 = int_to_ptr.hbm [resolvable:$true] %s417
          %420 = dma.vmem_to_hbm [thread:$0]  %s416, 256, %s418, %s400
        $region56: #{tpu_custom_call.1} parent=39 // pred_fallthru
          _
      $region40: #{tpu_custom_call.1} parent=5 // pred_fallthru
        _
      %p421 = scmp.le.s32.totalorder 2, %s18
      // Predicated region
      $region57: #{tpu_custom_call.1} parent=5 // pred_check
        %p422 = pneg %p421
      $region58: #{tpu_custom_call.1} parent=5 // pred_check_branch
        %424 = sbr.rel (%p422) target = $region60
      $region59: #{tpu_custom_call.1} parent=5 // pred_region
        %s425 = ssub.s32 %s18, 2
        // Predicated region
        $region61: #{tpu_custom_call.1} parent=59 // pred_check
          %p426 = pneg %p173
        $region62: #{tpu_custom_call.1} parent=59 // pred_check_branch
          %428 = sbr.rel (%p426) target = $region64
        $region63: #{tpu_custom_call.1} parent=59 // pred_region
          %s429 = sand.u32 %s158, 1
          %s430 = scalar_lea.sflag [#allocation4], %s429
          %s431 = sand.u32 %s158, 1
          %s432 = smul.addr %s431, 16
          %s433 = scalar_lea.vmem [#allocation8], %s432
          %435 = dma.done %s430, 256
        $region64: #{tpu_custom_call.1} parent=59 // pred_fallthru
          _
      $region60: #{tpu_custom_call.1} parent=5 // pred_fallthru
        _
    $region6: #{tpu_custom_call.1} parent=1 // loop_footer
      %s22 = sadd.s32 1, %s18
    $region7: #{tpu_custom_call.1} parent=1 // loop_footer_branch
      %17 = sbr.rel target = $region3
    $region8: #{tpu_custom_call.1} parent=1 // loop_exit
      _
    %436 = vsyncpa [#allocation3], 1
    %s437 = scalar_lea.sflag [#allocation3], 1
    %438 = vsyncpa %s437, 1
    %439 = vsyncpa [#allocation6], 1
    %440 = vsyncpa [#allocation4], 1
    %s441 = scalar_lea.sflag [#allocation4], 1
    %442 = vsyncpa %s441, 1

// kernel: tpu_custom_call.1
$region0: #{tpu_custom_call.1}
  #allocation0 [shape = 'u32[]', space=smem, size = 0x4, offset = 0x4, fixed_abs, tag = 'smem constant byte address 0x4 - core index']
  #allocation1 [shape = 'u32[72,128]{1,0:T(1,128)}', space=vmem, size = 0x9000, scoped, tag = 'internal scratch']
  %s0 = inlined_call_operand.hbm [shape: f32[2,16,64], index: 0, kind: input, shape index: {}]
  %s1 = inlined_call_operand.hbm [shape: f32[1,64], index: 1, kind: input, shape index: {}]
  %s2 = inlined_call_operand.vmem [shape: f32[1,64], index: 2, kind: input, shape index: {}]
  %s3 = inlined_call_operand.hbm [shape: f32[64,192], index: 3, kind: input, shape index: {}]
  %s4 = inlined_call_operand.vmem [shape: f32[1,192], index: 4, kind: input, shape index: {}]
  %s5 = inlined_call_operand.hbm [shape: f32[2,16,192], index: 5, kind: output, shape index: {}]
  %s6 = sld [smem:[#allocation0]]
  $region65: #{tpu_custom_call.1} parent=0
    _
  %s8 = ssub.s32 1, %s6
  %s9 = scalar_select 0, %s8, %s6
  $region1: #{tpu_custom_call.1} parent=0
    #allocation2 [shape = 'u8[8192]{0}', space=vmem, size = 0x2000, scoped, tag = 'input window, operand 0']
    #allocation3 [shape = 's32[2]{0}', space=sflag, size = 0x8, scoped, tag = 'scoped memory for tpu_custom_call.1']
    #allocation4 [shape = 's32[2]{0}', space=sflag, size = 0x8, scoped, tag = 'scoped memory for tpu_custom_call.1']
    #allocation5 [shape = 'u8[512]{0}', space=vmem, size = 0x400, scoped, tag = 'input window, operand 1, single buffered']
    #allocation6 [shape = 's32[1]{0}', space=sflag, size = 0x4, scoped, tag = 'scoped memory for tpu_custom_call.1']
    #allocation7 [shape = 'u8[65536]{0}', space=vmem, size = 0x10000, scoped, tag = 'input window, operand 3, single buffered']
    #allocation8 [shape = 'u8[16384]{0}', space=vmem, size = 0x4000, scoped, tag = 'output window, operand 0']
    %10 = vsyncpa [#allocation3], 0
    %s11 = scalar_lea.sflag [#allocation3], 1
    %12 = vsyncpa %s11, 0
    %13 = vsyncpa [#allocation6], 0
    %14 = vsyncpa [#allocation4], 0
    %s15 = scalar_lea.sflag [#allocation4], 1
    %16 = vsyncpa %s15, 0
    loop: start=0, step=1, limit=6
    $region2: #{tpu_custom_call.1} parent=1 // loop_pre_header
      _
    $region3: #{tpu_custom_call.1} parent=1 // loop_header
      %s18 = sphi 0, %s22
      %p19 = scmp.ge.s32.totalorder %s18, 6
      %s25 = sphi 0, %s37
      %s26 = sphi 0, %s33
      %s27 = sphi 0, %s25
      %s28 = sphi 0, %s26
      %s29 = sphi 0, %s27
      %s30 = sphi 0, %s28
      %s42 = sphi 0, %s44
      %s45 = sphi 0, %s42
      %s46 = sphi 0, %s45
      %s62 = sphi 0, %s46
      %s66 = sphi 0, %s66
      %s68 = sphi 0, %s66
      %s69 = sphi 0, %s68
      %s83 = sphi 0, %s69
      %s87 = sphi 0, %s87
      %s89 = sphi 0, %s87
      %s90 = sphi 0, %s89
      %s104 = sphi 0, %s90
      %s108 = sphi 0, %s108
      %s110 = sphi 0, %s108
      %s111 = sphi 0, %s110
      %s125 = sphi 0, %s111
      %s129 = sphi 0, %s129
      %s131 = sphi 0, %s129
      %s132 = sphi 0, %s131
      %s146 = sphi 0, %s132
      %s154 = sphi 0, %s156
      %s157 = sphi 0, %s154
      %s158 = sphi 0, %s157
      %s174 = sphi 0, %s158
    $region4: #{tpu_custom_call.1} parent=1 // loop_header_branch
      %21 = sbr.rel (%p19) target = $region8
    $region5: #{tpu_custom_call.1} parent=1 // loop_body
      %s23 = ssub.s32 %s18, 1
      %s24 = ssub.s32 %s18, 2
      %s31 = sadd.s32 1, %s26
      %p32 = scmp.ge.s32.totalorder %s31, 2
      %s33 = scalar_select %p32, 0, %s31
      %s34 = sadd.s32 1, %s25
      %s35 = scalar_select %p32, %s34, %s25
      %p36 = scmp.ge.s32.totalorder %s35, 2
      %s37 = scalar_select %p36, 0, %s35
      %s38 = ssub.s32 %s25, %s37
      %s39 = ssub.s32 %s26, %s33
      %s40 = sor.u32 %s38, %s39
      %p41 = scmp.eq.s32.totalorder %s40, 0
      %s43 = sadd.s32 %s42, 1
      %s44 = scalar_select %p41, %s42, %s43
      %p47 = pneg %p41
      %p48 = scmp.eq.s32.totalorder %s18, 3
      %p49 = por %p47, %p48
      %p50 = scmp.ne.s32.totalorder %s42, %s45
      %p51 = scmp.eq.s32.totalorder %s18, 0
      %p52 = por %p50, %p51
      %p53 = scmp.ne.s32.totalorder %s42, %s45
      %p54 = scmp.eq.s32.totalorder %s23, 3
      %p55 = por %p53, %p54
      %p56 = scmp.ne.s32.totalorder %s45, %s46
      %p57 = scmp.eq.s32.totalorder %s23, 0
      %p58 = por %p56, %p57
      %p59 = scmp.ne.s32.totalorder %s45, %s46
      %p60 = scmp.eq.s32.totalorder %s24, 3
      %p61 = por %p59, %p60
      %p63 = scmp.ne.s32.totalorder %s46, %s62
      %p64 = scmp.eq.s32.totalorder %s24, 0
      %p65 = por %p63, %p64
      %s67 = sadd.s32 %s66, 1
      %p70 = scmp.eq.s32.totalorder %s18, 3
      %p71 = scmp.ne.s32.totalorder %s66, %s68
      %p72 = scmp.eq.s32.totalorder %s18, 0
      %p73 = por %p71, %p72
      %p74 = scmp.ne.s32.totalorder %s66, %s68
      %p75 = scmp.eq.s32.totalorder %s23, 3
      %p76 = por %p74, %p75
      %p77 = scmp.ne.s32.totalorder %s68, %s69
      %p78 = scmp.eq.s32.totalorder %s23, 0
      %p79 = por %p77, %p78
      %p80 = scmp.ne.s32.totalorder %s68, %s69
      %p81 = scmp.eq.s32.totalorder %s24, 3
      %p82 = por %p80, %p81
      %p84 = scmp.ne.s32.totalorder %s69, %s83
      %p85 = scmp.eq.s32.totalorder %s24, 0
      %p86 = por %p84, %p85
      %s88 = sadd.s32 %s87, 1
      %p91 = scmp.eq.s32.totalorder %s18, 3
      %p92 = scmp.ne.s32.totalorder %s87, %s89
      %p93 = scmp.eq.s32.totalorder %s18, 0
      %p94 = por %p92, %p93
      %p95 = scmp.ne.s32.totalorder %s87, %s89
      %p96 = scmp.eq.s32.totalorder %s23, 3
      %p97 = por %p95, %p96
      %p98 = scmp.ne.s32.totalorder %s89, %s90
      %p99 = scmp.eq.s32.totalorder %s23, 0
      %p100 = por %p98, %p99
      %p101 = scmp.ne.s32.totalorder %s89, %s90
      %p102 = scmp.eq.s32.totalorder %s24, 3
      %p103 = por %p101, %p102
      %p105 = scmp.ne.s32.totalorder %s90, %s104
      %p106 = scmp.eq.s32.totalorder %s24, 0
      %p107 = por %p105, %p106
      %s109 = sadd.s32 %s108, 1
      %p112 = scmp.eq.s32.totalorder %s18, 3
      %p113 = scmp.ne.s32.totalorder %s108, %s110
      %p114 = scmp.eq.s32.totalorder %s18, 0
      %p115 = por %p113, %p114
      %p116 = scmp.ne.s32.totalorder %s108, %s110
      %p117 = scmp.eq.s32.totalorder %s23, 3
      %p118 = por %p116, %p117
      %p119 = scmp.ne.s32.totalorder %s110, %s111
      %p120 = scmp.eq.s32.totalorder %s23, 0
      %p121 = por %p119, %p120
      %p122 = scmp.ne.s32.totalorder %s110, %s111
      %p123 = scmp.eq.s32.totalorder %s24, 3
      %p124 = por %p122, %p123
      %p126 = scmp.ne.s32.totalorder %s111, %s125
      %p127 = scmp.eq.s32.totalorder %s24, 0
      %p128 = por %p126, %p127
      %s130 = sadd.s32 %s129, 1
      %p133 = scmp.eq.s32.totalorder %s18, 3
      %p134 = scmp.ne.s32.totalorder %s129, %s131
      %p135 = scmp.eq.s32.totalorder %s18, 0
      %p136 = por %p134, %p135
      %p137 = scmp.ne.s32.totalorder %s129, %s131
      %p138 = scmp.eq.s32.totalorder %s23, 3
      %p139 = por %p137, %p138
      %p140 = scmp.ne.s32.totalorder %s131, %s132
      %p141 = scmp.eq.s32.totalorder %s23, 0
      %p142 = por %p140, %p141
      %p143 = scmp.ne.s32.totalorder %s131, %s132
      %p144 = scmp.eq.s32.totalorder %s24, 3
      %p145 = por %p143, %p144
      %p147 = scmp.ne.s32.totalorder %s132, %s146
      %p148 = scmp.eq.s32.totalorder %s24, 0
      %p149 = por %p147, %p148
      %s150 = ssub.s32 %s25, %s37
      %s151 = ssub.s32 %s26, %s33
      %s152 = sor.u32 %s150, %s151
      %p153 = scmp.eq.s32.totalorder %s152, 0
      %s155 = sadd.s32 %s154, 1
      %s156 = scalar_select %p153, %s154, %s155
      %p159 = pneg %p153
      %p160 = scmp.eq.s32.totalorder %s18, 3
      %p161 = por %p159, %p160
      %p162 = scmp.ne.s32.totalorder %s154, %s157
      %p163 = scmp.eq.s32.totalorder %s18, 0
      %p164 = por %p162, %p163
      %p165 = scmp.ne.s32.totalorder %s154, %s157
      %p166 = scmp.eq.s32.totalorder %s23, 3
      %p167 = por %p165, %p166
      %p168 = scmp.ne.s32.totalorder %s157, %s158
      %p169 = scmp.eq.s32.totalorder %s23, 0
      %p170 = por %p168, %p169
      %p171 = scmp.ne.s32.totalorder %s157, %s158
      %p172 = scmp.eq.s32.totalorder %s24, 3
      %p173 = por %p171, %p172
      %p175 = scmp.ne.s32.totalorder %s158, %s174
      %p176 = scmp.eq.s32.totalorder %s24, 0
      %p177 = por %p175, %p176
      %p178 = scmp.le.s32.totalorder 1, %s18
      %p179 = scmp.lt.s32.totalorder %s18, 5
      %p180 = pnand %p178, %p179
      %p181 = pneg %p180
      // Predicated region
      $region9: #{tpu_custom_call.1} parent=5 // pred_check
        _
      $region10: #{tpu_custom_call.1} parent=5 // pred_check_branch
        %183 = sbr.rel (%p180) target = $region12
      $region11: #{tpu_custom_call.1} parent=5 // pred_region
        %s184 = ssub.s32 %s18, 1
        // Predicated region
        $region13: #{tpu_custom_call.1} parent=11 // pred_check
          %p185 = pneg %p79
        $region14: #{tpu_custom_call.1} parent=11 // pred_check_branch
          %187 = sbr.rel (%p185) target = $region16
        $region15: #{tpu_custom_call.1} parent=11 // pred_region
          %189 = vsyncadd [#allocation6], 0
          %s191 = sshll.u32 %s1, 4
          %s192 = int_to_ptr.hbm [resolvable:$true] %s191
          %s193 = sshll.u32 [#allocation5], 4
          %s194 = int_to_ptr.vmem [resolvable:$true] %s193
          %196 = dma.hbm_to_vmem [thread:$0]  %s192, 16, %s194, [#allocation6]
        $region16: #{tpu_custom_call.1} parent=11 // pred_fallthru
          _
        // Predicated region
        $region17: #{tpu_custom_call.1} parent=11 // pred_check
          %p197 = pneg %p100
        $region18: #{tpu_custom_call.1} parent=11 // pred_check_branch
          %199 = sbr.rel (%p197) target = $region20
        $region19: #{tpu_custom_call.1} parent=11 // pred_region
          _
        $region20: #{tpu_custom_call.1} parent=11 // pred_fallthru
          _
        // Predicated region
        $region21: #{tpu_custom_call.1} parent=11 // pred_check
          %p200 = pneg %p121
        $region22: #{tpu_custom_call.1} parent=11 // pred_check_branch
          %202 = sbr.rel (%p200) target = $region24
        $region23: #{tpu_custom_call.1} parent=11 // pred_region
          %204 = vsyncadd [#allocation6], 0
          %s205 = sshll.u32 %s3, 4
          %s206 = int_to_ptr.hbm [resolvable:$true] %s205
          %s207 = sshll.u32 [#allocation7], 4
          %s208 = int_to_ptr.vmem [resolvable:$true] %s207
          %213 = dma.hbm_to_vmem [thread:$0]  %s206, 2048, %s208, [#allocation6], 256, 256, 16
        $region24: #{tpu_custom_call.1} parent=11 // pred_fallthru
          _
        // Predicated region
        $region25: #{tpu_custom_call.1} parent=11 // pred_check
          %p214 = pneg %p142
        $region26: #{tpu_custom_call.1} parent=11 // pred_check_branch
          %216 = sbr.rel (%p214) target = $region28
        $region27: #{tpu_custom_call.1} parent=11 // pred_region
          _
        $region28: #{tpu_custom_call.1} parent=11 // pred_fallthru
          _
      $region12: #{tpu_custom_call.1} parent=5 // pred_fallthru
        _
      %p217 = scmp.lt.s32.totalorder %s18, 4
      // Predicated region
      $region29: #{tpu_custom_call.1} parent=5 // pred_check
        %p218 = pneg %p217
      $region30: #{tpu_custom_call.1} parent=5 // pred_check_branch
        %220 = sbr.rel (%p218) target = $region32
      $region31: #{tpu_custom_call.1} parent=5 // pred_region
        // Predicated region
        $region33: #{tpu_custom_call.1} parent=31 // pred_check
          %p221 = pneg %p52
        $region34: #{tpu_custom_call.1} parent=31 // pred_check_branch
          %223 = sbr.rel (%p221) target = $region36
        $region35: #{tpu_custom_call.1} parent=31 // pred_region
          %s224 = sand.u32 %s42, 1
          %s225 = scalar_lea.sflag [#allocation3], %s224
          %s226 = sand.u32 %s42, 1
          %s227 = smul.addr %s226, 8
          %s228 = scalar_lea.vmem [#allocation2], %s227
          %230 = vsyncadd %s225, 0
          %s231 = smul.addr %s25, 2
          %s232 = sadd.s32 %s26, %s231
          %s233 = smul.addr %s232, 8
          %s234 = scalar_lea.hbm %s0, %s233
          %s236 = sshll.u32 %s234, 4
          %s237 = int_to_ptr.hbm [resolvable:$true] %s236
          %s238 = sshll.u32 %s228, 4
          %s239 = int_to_ptr.vmem [resolvable:$true] %s238
          %241 = dma.hbm_to_vmem [thread:$0]  %s237, 128, %s239, %s225
        $region36: #{tpu_custom_call.1} parent=31 // pred_fallthru
          _
      $region32: #{tpu_custom_call.1} parent=5 // pred_fallthru
        _
      %p242 = scmp.le.s32.totalorder 1, %s18
      %p243 = scmp.lt.s32.totalorder %s18, 5
      %p244 = pnand %p242, %p243
      %p245 = pneg %p244
      // Predicated region
      $region37: #{tpu_custom_call.1} parent=5 // pred_check
        _
      $region38: #{tpu_custom_call.1} parent=5 // pred_check_branch
        %247 = sbr.rel (%p244) target = $region40
      $region39: #{tpu_custom_call.1} parent=5 // pred_region
        %s248 = ssub.s32 %s18, 1
        %s249 = sand.u32 %s45, 1
        %s250 = scalar_lea.sflag [#allocation3], %s249
        %s251 = sand.u32 %s45, 1
        %s252 = smul.addr %s251, 8
        %s253 = scalar_lea.vmem [#allocation2], %s252
        // Predicated region
        $region41: #{tpu_custom_call.1} parent=39 // pred_check
          %p254 = pneg %p58
        $region42: #{tpu_custom_call.1} parent=39 // pred_check_branch
          %256 = sbr.rel (%p254) target = $region44
        $region43: #{tpu_custom_call.1} parent=39 // pred_region
          %258 = dma.done %s250, 128
        $region44: #{tpu_custom_call.1} parent=39 // pred_fallthru
          _
        // Predicated region
        $region45: #{tpu_custom_call.1} parent=39 // pred_check
          %p259 = pneg %p79
        $region46: #{tpu_custom_call.1} parent=39 // pred_check_branch
          %261 = sbr.rel (%p259) target = $region48
        $region47: #{tpu_custom_call.1} parent=39 // pred_region
          %263 = dma.done [#allocation6], 16
        $region48: #{tpu_custom_call.1} parent=39 // pred_fallthru
          _
        // Predicated region
        $region49: #{tpu_custom_call.1} parent=39 // pred_check
          %p264 = pneg %p121
        $region50: #{tpu_custom_call.1} parent=39 // pred_check_branch
          %266 = sbr.rel (%p264) target = $region52
        $region51: #{tpu_custom_call.1} parent=39 // pred_region
          %268 = dma.done [#allocation6], 2048
        $region52: #{tpu_custom_call.1} parent=39 // pred_fallthru
          _
        %s269 = sand.u32 %s45, 1
        %s270 = scalar_lea.sflag [#allocation3], %s269
        %s271 = sand.u32 %s45, 1
        %s272 = smul.addr %s271, 8
        %s273 = scalar_lea.vmem [#allocation2], %s272
        %p274 = pneg %p58
        %p275 = pneg %p55
        %p276 = pneg %p79
        %p277 = pneg %p76
        %p278 = pneg %p100
        %p279 = pneg %p97
        %p280 = pneg %p121
        %p281 = pneg %p118
        %p282 = pneg %p142
        %p283 = pneg %p139
        %p284 = pneg %p170
        %p285 = pneg %p167
        %s286 = sand.u32 %s157, 1
        %s287 = scalar_lea.sflag [#allocation4], %s286
        %s288 = sand.u32 %s157, 1
        %s289 = smul.addr %s288, 16
        %s290 = scalar_lea.vmem [#allocation8], %s289
        %v291 = vld [vmem:[%s253] sm:$0xff]
        %v292 = vld [vmem:[#allocation5] sm:$0x1]
        %v293 = vld [vmem:[%s2] sm:$0x1]
        %vm294 = vcmask 523264
        %v295 = vsel %vm294, %v291, 0.0
        %296 = vadd.xlane.f32.xlu0 %v295
        %v297 = vpop.xlane.xlu0 %296
        %v298 = vrcp.pop 64.0
        %v299 = vmul.f32 64.0, %v298
        %v300 = vsub.f32 1.0, %v299
        %v301 = vmul.f32 %v298, %v300
        %v302 = vadd.f32 %v298, %v301
        %vm303 = vweird.f32 %v298
        %v304 = vsel %vm303, %v298, %v302
        %v305 = vmul.f32 %v297, %v304
        %v306 = vsub.f32 %v291, %v305
        %v307 = vmul.f32 %v306, %v306
        %v308 = vsel %vm294, %v307, 0.0
        %309 = vadd.xlane.f32.xlu0 %v308
        %v310 = vpop.xlane.xlu0 %309
        %v311 = vmul.f32 %v310, %v304
        %v312 = vadd.f32 %v311, 1e-05
        %v313 = vrsqrt.pop %v312
        %v314 = vmul.f32 %v313, %v312
        %v315 = vmul.f32 %v314, %v313
        %v316 = vmul.f32 0.5, %v315
        %v317 = vsub.f32 1.5, %v316
        %v318 = vmul.f32 %v313, %v317
        %vm319 = vweird.f32 %v312
        %vm320 = vweird.f32 %v313
        %vm321 = vmor %vm319, %vm320
        %v322 = vsel %vm321, %v313, %v318
        %v323 = vmul.f32 %v306, %v322
        %v325 = vperm.slane %v292, 0
        %v327 = vmul.f32 %v323, %v325
        %v329 = vperm.slane %v293, 0
        %v331 = vadd.f32 %v327, %v329
        %v332 = vld [vmem:[#allocation7] sm:$0xff]
        %v333 = vld [vmem:[#allocation7 + $0x8] sm:$0xff]
        %v334 = vld [vmem:[#allocation7 + $0x10] sm:$0xff]
        %v335 = vld [vmem:[#allocation7 + $0x18] sm:$0xff]
        %v336 = vld [vmem:[#allocation7 + $0x20] sm:$0xff]
        %v337 = vld [vmem:[#allocation7 + $0x28] sm:$0xff]
        %v338 = vld [vmem:[#allocation7 + $0x30] sm:$0xff]
        %v339 = vld [vmem:[#allocation7 + $0x38] sm:$0xff]
        %v340 = vld [vmem:[#allocation7 + $0x40] sm:$0xff]
        %v341 = vld [vmem:[#allocation7 + $0x48] sm:$0xff]
        %v342 = vld [vmem:[#allocation7 + $0x50] sm:$0xff]
        %v343 = vld [vmem:[#allocation7 + $0x58] sm:$0xff]
        %v344 = vld [vmem:[#allocation7 + $0x60] sm:$0xff]
        %v345 = vld [vmem:[#allocation7 + $0x68] sm:$0xff]
        %v346 = vld [vmem:[#allocation7 + $0x70] sm:$0xff]
        %v347 = vld [vmem:[#allocation7 + $0x78] sm:$0xff]
        %v348 = vld [vmem:[%s4] sm:$0x3]
        %v350 = vperm.slane %v348, 0
        %v351 = vperm.slane %v348, 1
        %v355 = vsel %vm294, %v331, 0
        %357 = vmatpush.msra.mxu0 0.0
        %358 = vmatpush.msra.mxu0 0.0
        %359 = vmatpush.msra.mxu0 0.0
        %360 = vmatpush.msra.mxu0 0.0
        %361 = vmatpush.msra.mxu0 0.0
        %362 = vmatpush.msra.mxu0 0.0
        %363 = vmatpush.msra.mxu0 0.0
        %364 = vmatpush.msra.mxu0 0.0
        %365 = vmatpush.msra.mxu0 %v346
        %366 = vmatpush.msra.mxu0 %v344
        %367 = vmatpush.msra.mxu0 %v342
        %368 = vmatpush.msra.mxu0 %v340
        %369 = vmatpush.msra.mxu0 %v338
        %370 = vmatpush.msra.mxu0 %v336
        %371 = vmatpush.msra.mxu0 %v334
        %372 = vmatpush.msra.mxu0 %v332
        %373 = vmatmul.f32.gmra.mxu0 %v355
        %v374 = vpop.f32.mrf.mxu0
        %v375 = vadd.f32 %v350, %v374
        %376 = vdwg.mxu0
        %377 = vmatpush.msra.mxu0 0.0
        %378 = vmatpush.msra.mxu0 0.0
        %379 = vmatpush.msra.mxu0 0.0
        %380 = vmatpush.msra.mxu0 0.0
        %381 = vmatpush.msra.mxu0 0.0
        %382 = vmatpush.msra.mxu0 0.0
        %383 = vmatpush.msra.mxu0 0.0
        %384 = vmatpush.msra.mxu0 0.0
        %385 = vmatpush.msra.mxu0 %v347
        %386 = vmatpush.msra.mxu0 %v345
        %387 = vmatpush.msra.mxu0 %v343
        %388 = vmatpush.msra.mxu0 %v341
        %389 = vmatpush.msra.mxu0 %v339
        %390 = vmatpush.msra.mxu0 %v337
        %391 = vmatpush.msra.mxu0 %v335
        %392 = vmatpush.msra.mxu0 %v333
        %393 = vmatmul.f32.gmra.mxu0 %v355
        %v394 = vpop.f32.mrf.mxu0
        %v395 = vadd.f32 %v351, %v394
        %396 = vdwg.mxu0
        %397 = vst [vmem:[%s290] sm:$0xff] %v375
        %398 = vst.msk [vmem:[%s290 + $0x8] sm:$0xff] %vm294, %v395
        %s399 = sand.u32 %s157, 1
        %s400 = scalar_lea.sflag [#allocation4], %s399
        %s401 = sand.u32 %s157, 1
        %s402 = smul.addr %s401, 16
        %s403 = scalar_lea.vmem [#allocation8], %s402
        // Predicated region
        $region53: #{tpu_custom_call.1} parent=39 // pred_check
          %p404 = pneg %p167
        $region54: #{tpu_custom_call.1} parent=39 // pred_check_branch
          %406 = sbr.rel (%p404) target = $region56
        $region55: #{tpu_custom_call.1} parent=39 // pred_region
          %408 = vsyncadd %s400, 0
          %s409 = smul.addr %s28, 2
          %s410 = smul.addr %s27, 4
          %s411 = sadd.s32 %s409, %s410
          %s412 = smul.addr %s411, 8
          %s413 = scalar_lea.hbm %s5, %s412
          %s415 = sshll.u32 %s403, 4
          %s416 = int_to_ptr.vmem [resolvable:$true] %s415
          %s417 = sshll.u32 %s413, 4
          %s418 = int_to_ptr.hbm [resolvable:$true] %s417
          %420 = dma.vmem_to_hbm [thread:$0]  %s416, 256, %s418, %s400
        $region56: #{tpu_custom_call.1} parent=39 // pred_fallthru
          _
      $region40: #{tpu_custom_call.1} parent=5 // pred_fallthru
        _
      %p421 = scmp.le.s32.totalorder 2, %s18
      // Predicated region
      $region57: #{tpu_custom_call.1} parent=5 // pred_check
        %p422 = pneg %p421
      $region58: #{tpu_custom_call.1} parent=5 // pred_check_branch
        %424 = sbr.rel (%p422) target = $region60
      $region59: #{tpu_custom_call.1} parent=5 // pred_region
        %s425 = ssub.s32 %s18, 2
        // Predicated region
        $region61: #{tpu_custom_call.1} parent=59 // pred_check
          %p426 = pneg %p173
        $region62: #{tpu_custom_call.1} parent=59 // pred_check_branch
          %428 = sbr.rel (%p426) target = $region64
        $region63: #{tpu_custom_call.1} parent=59 // pred_region
          %s429 = sand.u32 %s158, 1
          %s430 = scalar_lea.sflag [#allocation4], %s429
          %s431 = sand.u32 %s158, 1
          %s432 = smul.addr %s431, 16
          %s433 = scalar_lea.vmem [#allocation8], %s432
          %435 = dma.done %s430, 256
        $region64: #{tpu_custom_call.1} parent=59 // pred_fallthru
          _
      $region60: #{tpu_custom_call.1} parent=5 // pred_fallthru
        _
    $region6: #{tpu_custom_call.1} parent=1 // loop_footer
      %s22 = sadd.s32 1, %s18
    $region7: #{tpu_custom_call.1} parent=1 // loop_footer_branch
      %17 = sbr.rel target = $region3
    $region8: #{tpu_custom_call.1} parent=1 // loop_exit
      _
    %436 = vsyncpa [#allocation3], 1
    %s437 = scalar_lea.sflag [#allocation3], 1
    %438 = vsyncpa %s437, 1
    %439 = vsyncpa [#allocation6], 1
    %440 = vsyncpa [#allocation4], 1
    %s441 = scalar_lea.sflag [#allocation4], 1
    %442 = vsyncpa %s441, 1

</llo_original>
